<compile_context>
chip_gen: v7x
topology: tpu7x:2x2x1
jax: 0.10.0
libtpu: 0.0.40
codegen_flags: <defaults>
</compile_context>

<pallas_src>
import math

import jax
import jax.numpy as jnp
from jax import lax
from jax.experimental import pallas as pl
from jax.experimental.pallas import tpu as pltpu


def _make_scores_kernel(dim, group, aq, rem, c0, inv_temp, pool_scale):
    """Kernel emitting |pooled angle sim| / temperature for one partner tile.

    Partner tile t holds flat rows [t*AQ*G, (t+1)*AQ*G) of the partner array
    (global flat index = flat_offset + row).  Static layout facts used here:
      * anchors needed by tile t are q rows [t*AQ + c0, t*AQ + c0 + AQ + (rem>0))
        where c0 = flat_offset // G and rem = flat_offset % G,
      * local partner row u pairs with local anchor (rem + u) // G.
    Every captured constant is a plain Python int/float (no traced constants).
    """
    d2 = dim // 2
    shift1 = 1 if rem > 0 else 0
    scale = float(pool_scale) * float(inv_temp)

    def kernel(q_ref, w_ref, out_ref):
        t = pl.program_id(0)
        a_start = t * aq + c0

        def anchor_window(start):
            qa = q_ref[pl.ds(start, aq), :].astype(jnp.float32)        # (AQ, D)
            inv_dz = lax.rsqrt(jnp.sum(qa * qa, axis=-1, keepdims=True))
            return qa[:, :d2], qa[:, d2:], inv_dz

        # At most two distinct anchor windows per tile (straddle when rem > 0).
        windows = [anchor_window(a_start)]
        if shift1:
            windows.append(anchor_window(a_start + 1))

        # TODO(synk): for very large `group`, chunk this static unroll; the
        # body is tiny and carries no state, so small G (typical) is fine.
        for c in range(group):
            a, b, inv_dz = windows[(rem + c) // group]
            # Residue class c: partner rows {c, c+G, ...} via a strided Ref read
            # (static start/size/stride) -- no full-block value load.
            w = w_ref[pl.ds(c, aq, stride=group), :].astype(jnp.float32)   # (AQ, D)
            ch = w[:, :d2]
            dh = w[:, d2:]
            # sum-pooled "angle" product: sum_k (re + im) = sum_k a*(ch-dh) + b*(ch+dh)
            z = jnp.sum(a * (ch - dh) + b * (ch + dh), axis=-1, keepdims=True)
            inv_dw = lax.rsqrt(jnp.sum(w * w, axis=-1, keepdims=True))
            # Output is ~D x smaller than the inputs, so store density is immaterial.
            out_ref[:, c:c + 1] = jnp.abs(z) * scale * inv_dz * inv_dw

    return kernel


def _pick_aq(rows, batch, dim, group, w_itemsize, q_itemsize):
    """Anchor rows per tile (partner tile = aq*group rows).  0 => jnp fallback."""
    sub = max(8, 32 // max(int(w_itemsize), 1))    # sublane packing: f32=8, bf16=16, int8=32
    base = sub // math.gcd(group, sub)             # smallest aq with (aq*group) % sub == 0
    if rows < base * group:
        return 0
    # ~24 MiB VMEM budget, inside the 32 MiB scoped limit requested below
    # (safe on v5e/v6e and on v7x's 64 MiB-per-TC physical VMEM).
    q_bytes = 2 * batch * dim * int(q_itemsize)    # resident q (double-buffered)
    budget = 24 * 1024 * 1024 - q_bytes
    if budget <= 0:
        # TODO(synk): tile q as well (block-aligned anchor windows) for very
        #             large B*D instead of falling back to the jnp path.
        return 0
    per_aq = 2 * group * dim * int(w_itemsize) + 6 * dim * 4   # 2x partner rows + f32 temps
    aq = min(budget // per_aq, 1024, rows // group)
    aq = (aq // base) * base
    return int(max(aq, 0))


def _pair_scores_jnp(q, w, flat_offset, group, pool_scale, inv_temp):
    """Plain-JAX equivalent, used only for sub-tile leftovers / tiny inputs."""
    rows, dim = w.shape
    d2 = dim // 2
    idx = (flat_offset + jnp.arange(rows)) // group
    qa = q[idx].astype(jnp.float32)
    wf = w.astype(jnp.float32)
    a, b = qa[:, :d2], qa[:, d2:]
    ch, dh = wf[:, :d2], wf[:, d2:]
    z = jnp.sum(a * (ch - dh) + b * (ch + dh), axis=-1)
    inv_dz = lax.rsqrt(jnp.sum(qa * qa, axis=-1))
    inv_dw = lax.rsqrt(jnp.sum(wf * wf, axis=-1))
    return jnp.abs(z) * (float(pool_scale) * float(inv_temp)) * inv_dz * inv_dw


def _pair_scores(q, w, flat_offset, group, pool_scale, inv_temp):
    """s_j = |pooled_angle_sim(q[(flat_offset + j)//group], w[j])| / temperature."""
    rows, dim = w.shape
    batch = q.shape[0]
    if rows == 0:
        return jnp.zeros((0,), jnp.float32)

    c0, rem = divmod(flat_offset, group)
    aq = _pick_aq(rows, batch, dim, group, w.dtype.itemsize, q.dtype.itemsize)
    tp = aq * group
    tiles = rows // tp if tp else 0
    rows_full = tiles * tp

    parts = []
    if tiles > 0:
        kernel = _make_scores_kernel(dim, group, aq, rem, c0, inv_temp, pool_scale)
        scores = pl.pallas_call(
            kernel,
            out_shape=jax.ShapeDtypeStruct((tiles, aq, group), jnp.float32),
            grid=(tiles,),
            in_specs=[
                # q resident in VMEM: full-array block, constant index (DMA'd once).
                pl.BlockSpec((batch, dim), lambda t: (0, 0)),
                # flat-contiguous partner tile, streamed / double-buffered.
                pl.BlockSpec((tp, dim), lambda t: (t, 0)),
            ],
            # One (aq, group) score slab per tile; leading grid dim squeezed.
            out_specs=pl.BlockSpec((None, aq, group), lambda t: (t, 0, 0)),
            compiler_params=pltpu.CompilerParams(
                dimension_semantics=("parallel",),      # tiles are independent
                vmem_limit_bytes=32 * 1024 * 1024),
        )(q, w)
        parts.append(scores.reshape(-1))
    if rows_full < rows:
        parts.append(_pair_scores_jnp(q, w[rows_full:], flat_offset + rows_full,
                                      group, pool_scale, inv_temp))
    return parts[0] if len(parts) == 1 else jnp.concatenate(parts)


def _safe_logsumexp(x):
    if x.size == 0:
        return jnp.float32(-jnp.inf)
    return jax.scipy.special.logsumexp(x.astype(jnp.float32))


def angle_loss(q_emb, p_emb, n_emb, temperature=0.05, pooling_strategy="sum"):
    q = jnp.asarray(q_emb)     # native dtype straight to the kernel (no upcast)
    p = jnp.asarray(p_emb)
    n = jnp.asarray(n_emb)

    batch = n.shape[0]
    dim = q.shape[-1]
    if dim % 2 != 0:
        raise ValueError("embedding dim must be even (re/im halves)")
    if q.shape != (batch, dim) or p.shape != (batch, dim):
        raise ValueError("q_emb / p_emb must be (batch, dim) with batch == n_emb.shape[0]")

    n_flat = n.reshape(-1, dim)                    # free reshape, no HBM copy
    total = batch + n_flat.shape[0]
    if total % batch != 0:
        raise ValueError("p/n row count must be a multiple of the batch size")
    group = total // batch

    if pooling_strategy == "sum":
        pool_scale = 1.0
    elif pooling_strategy == "mean":
        pool_scale = 1.0 / dim
    else:
        raise ValueError(f"Unsupported pooling strategy: {pooling_strategy}")
    inv_temp = 1.0 / float(temperature)

    # W = [p; n_flat] is never materialized.  Flat rows r < batch are exactly p
    # (feed exp(-s)); rows r >= batch are exactly n_flat (feed exp(+s)):
    #   loss = logsumexp([0] ++ {s_r - s_c}) = logaddexp(0, LSE(s_hi) + LSE(-s_lo))
    s_lo = _pair_scores(q, p, 0, group, pool_scale, inv_temp)            # (batch,)
    s_hi = _pair_scores(q, n_flat, batch, group, pool_scale, inv_temp)   # (N,)

    lse_hi = _safe_logsumexp(s_hi)
    lse_lo = _safe_logsumexp(-s_lo)
    return jnp.logaddexp(jnp.float32(0.0), lse_hi + lse_lo)


def _reference_loss(q, p, n, temperature=0.05, pooling_strategy="sum"):
    """Pure-JAX mirror of the PyTorch AngleLoss.forward (self-test only)."""
    q = jnp.asarray(q, jnp.float32)
    p = jnp.asarray(p, jnp.float32)
    n = jnp.asarray(n, jnp.float32)
    bs = n.shape[0]
    d = q.shape[-1]
    d2 = d // 2
    a, b = q[..., :d2], q[..., d2:]
    c = jnp.concatenate([p[..., :d2], n[..., :d2].reshape(-1, d2)], axis=0)
    dd = jnp.concatenate([p[..., d2:], n[..., d2:].reshape(-1, d2)], axis=0)
    a = a[:, None, :]
    b = b[:, None, :]
    c = c.reshape(bs, -1, d2)
    dd = dd.reshape(bs, -1, d2)
    re = a * c + b * dd
    im = b * c - a * dd
    dz = jnp.sum(a ** 2 + b ** 2, axis=-1, keepdims=True) ** 0.5
    dw = jnp.sum(c ** 2 + dd ** 2, axis=-1, keepdims=True) ** 0.5
    re = re / (dz * dw)
    im = im / (dz * dw)
    sim = jnp.concatenate([re, im], axis=-1)
    if pooling_strategy == "sum":
        sim = jnp.sum(sim, axis=-1)
    elif pooling_strategy == "mean":
        sim = jnp.mean(sim, axis=-1)
    else:
        raise ValueError(f"Unsupported pooling strategy: {pooling_strategy}")
    sim = sim.reshape(-1)
    sim = jnp.abs(sim) / temperature
    diff = sim[:, None] - sim[None, :]
    diff = diff[bs:, :bs].reshape(-1)
    diff = jnp.concatenate([jnp.zeros((1,), diff.dtype), diff])
    return jax.scipy.special.logsumexp(diff, axis=0)


if __name__ == "__main__":
    key = jax.random.PRNGKey(0)
    kq, kp, kn = jax.random.split(key, 3)

    # Case 1: B % G == 0 (both lo and hi parts fully handled by the kernel).
    B, K, D = 8, 3, 32                       # group G = K + 1 = 4
    q_emb = jax.random.normal(kq, (B, D), dtype=jnp.float32)
    p_emb = jax.random.normal(kp, (B, D), dtype=jnp.float32)
    n_emb = jax.random.normal(kn, (B, K, D), dtype=jnp.float32)

    loss = jax.block_until_ready(angle_loss(q_emb, p_emb, n_emb,
                                            temperature=0.05,
                                            pooling_strategy="sum"))
    ref = jax.block_until_ready(_reference_loss(q_emb, p_emb, n_emb,
                                                temperature=0.05,
                                                pooling_strategy="sum"))
    assert jnp.allclose(loss, ref, atol=1e-4, rtol=1e-4), (loss, ref)

    # Case 2: B % G != 0 (anchor-straddle path + jnp remainder + mean pooling).
    B2, K2 = 6, 3
    q2 = jax.random.normal(jax.random.PRNGKey(1), (B2, D), dtype=jnp.float32)
    p2 = jax.random.normal(jax.random.PRNGKey(2), (B2, D), dtype=jnp.float32)
    n2 = jax.random.normal(jax.random.PRNGKey(3), (B2, K2, D), dtype=jnp.float32)

    loss2 = jax.block_until_ready(angle_loss(q2, p2, n2, temperature=0.05,
                                             pooling_strategy="mean"))
    ref2 = jax.block_until_ready(_reference_loss(q2, p2, n2, temperature=0.05,
                                                 pooling_strategy="mean"))
    assert jnp.allclose(loss2, ref2, atol=1e-4, rtol=1e-4), (loss2, ref2)

    print("KERNEL_OK")
</pallas_src>

<mosaic_0001>
module attributes {stable_mosaic.version = 11 : i64} {
  func.func @kernel(%arg0: i32, %arg1: memref<8x32xf32, #tpu.memory_space<vmem>>, %arg2: memref<8x32xf32, #tpu.memory_space<vmem>>, %arg3: memref<1x2x4xf32, #tpu.memory_space<vmem>>) attributes {dimension_semantics = [#tpu.dimension_semantics<parallel>], iteration_bounds = array<i64: 1>, scalar_prefetch = 0 : i64, scratch_operands = 0 : i64, tpu.core_type = #tpu.core_type<tc>, window_params = [{pipeline_mode = #tpu.pipeline_mode<synchronous>, transform_indices = @transform_0, window_bounds = array<i64: 8, 32>}, {transform_indices = @transform_1, window_bounds = array<i64: 8, 32>}, {transform_indices = @transform_2, window_bounds = array<i64: 1, 2, 4>}]} {
    %c2_i32 = arith.constant 2 : i32
    %0 = arith.muli %arg0, %c2_i32 : i32
    %c0_i32 = arith.constant 0 : i32
    %1 = arith.addi %0, %c0_i32 : i32
    %2 = arith.index_cast %1 : i32 to index
    %c0 = arith.constant 0 : index
    %3 = vector.load %arg1[%2, %c0] : memref<8x32xf32, #tpu.memory_space<vmem>>, vector<2x32xf32>
    %4 = arith.mulf %3, %3 : vector<2x32xf32>
    %cst = arith.constant dense<0.000000e+00> : vector<2xf32>
    %5 = vector.multi_reduction <add>, %4, %cst [1] : vector<2x32xf32> to vector<2xf32>
    %6 = vector.shape_cast %5 : vector<2xf32> to vector<2x1xf32>
    %7 = math.rsqrt %6 : vector<2x1xf32>
    %8 = vector.extract_strided_slice %3 {offsets = [0, 0], sizes = [2, 16], strides = [1, 1]} : vector<2x32xf32> to vector<2x16xf32>
    %9 = vector.extract_strided_slice %3 {offsets = [0, 16], sizes = [2, 16], strides = [1, 1]} : vector<2x32xf32> to vector<2x16xf32>
    %c0_0 = arith.constant 0 : index
    %c0_1 = arith.constant 0 : index
    %10 = tpu.strided_load %arg2[%c0_0, %c0_1] {strides = array<i32: 4, 1>} : memref<8x32xf32, #tpu.memory_space<vmem>>, vector<2x32xf32>
    %11 = vector.extract_strided_slice %10 {offsets = [0, 0], sizes = [2, 16], strides = [1, 1]} : vector<2x32xf32> to vector<2x16xf32>
    %12 = vector.extract_strided_slice %10 {offsets = [0, 16], sizes = [2, 16], strides = [1, 1]} : vector<2x32xf32> to vector<2x16xf32>
    %13 = arith.subf %11, %12 : vector<2x16xf32>
    %14 = arith.mulf %8, %13 : vector<2x16xf32>
    %15 = arith.addf %11, %12 : vector<2x16xf32>
    %16 = arith.mulf %9, %15 : vector<2x16xf32>
    %17 = arith.addf %14, %16 : vector<2x16xf32>
    %cst_2 = arith.constant dense<0.000000e+00> : vector<2xf32>
    %18 = vector.multi_reduction <add>, %17, %cst_2 [1] : vector<2x16xf32> to vector<2xf32>
    %19 = vector.shape_cast %18 : vector<2xf32> to vector<2x1xf32>
    %20 = arith.mulf %10, %10 : vector<2x32xf32>
    %cst_3 = arith.constant dense<0.000000e+00> : vector<2xf32>
    %21 = vector.multi_reduction <add>, %20, %cst_3 [1] : vector<2x32xf32> to vector<2xf32>
    %22 = vector.shape_cast %21 : vector<2xf32> to vector<2x1xf32>
    %23 = math.rsqrt %22 : vector<2x1xf32>
    %24 = math.absf %19 : vector<2x1xf32>
    %cst_4 = arith.constant 2.000000e+01 : f32
    %25 = vector.broadcast %cst_4 : f32 to vector<2x1xf32>
    %26 = arith.mulf %24, %25 : vector<2x1xf32>
    %27 = arith.mulf %26, %7 : vector<2x1xf32>
    %28 = arith.mulf %27, %23 : vector<2x1xf32>
    %c0_5 = arith.constant 0 : index
    %c0_6 = arith.constant 0 : index
    %c0_7 = arith.constant 0 : index
    %29 = vector.load %arg3[%c0_5, %c0_6, %c0_7] : memref<1x2x4xf32, #tpu.memory_space<vmem>>, vector<1x2x1xf32>
    %30 = vector.shape_cast %29 : vector<1x2x1xf32> to vector<2x1xf32>
    %31 = vector.shape_cast %28 : vector<2x1xf32> to vector<1x2x1xf32>
    tpu.vector_store %arg3[%c0_5, %c0_6, %c0_7], %31 {strides = array<i32>} : memref<1x2x4xf32, #tpu.memory_space<vmem>>, vector<1x2x1xf32>,
    %c1 = arith.constant 1 : index
    %c0_8 = arith.constant 0 : index
    %32 = tpu.strided_load %arg2[%c1, %c0_8] {strides = array<i32: 4, 1>} : memref<8x32xf32, #tpu.memory_space<vmem>>, vector<2x32xf32>
    %33 = vector.extract_strided_slice %32 {offsets = [0, 0], sizes = [2, 16], strides = [1, 1]} : vector<2x32xf32> to vector<2x16xf32>
    %34 = vector.extract_strided_slice %32 {offsets = [0, 16], sizes = [2, 16], strides = [1, 1]} : vector<2x32xf32> to vector<2x16xf32>
    %35 = arith.subf %33, %34 : vector<2x16xf32>
    %36 = arith.mulf %8, %35 : vector<2x16xf32>
    %37 = arith.addf %33, %34 : vector<2x16xf32>
    %38 = arith.mulf %9, %37 : vector<2x16xf32>
    %39 = arith.addf %36, %38 : vector<2x16xf32>
    %cst_9 = arith.constant dense<0.000000e+00> : vector<2xf32>
    %40 = vector.multi_reduction <add>, %39, %cst_9 [1] : vector<2x16xf32> to vector<2xf32>
    %41 = vector.shape_cast %40 : vector<2xf32> to vector<2x1xf32>
    %42 = arith.mulf %32, %32 : vector<2x32xf32>
    %cst_10 = arith.constant dense<0.000000e+00> : vector<2xf32>
    %43 = vector.multi_reduction <add>, %42, %cst_10 [1] : vector<2x32xf32> to vector<2xf32>
    %44 = vector.shape_cast %43 : vector<2xf32> to vector<2x1xf32>
    %45 = math.rsqrt %44 : vector<2x1xf32>
    %46 = math.absf %41 : vector<2x1xf32>
    %cst_11 = arith.constant 2.000000e+01 : f32
    %47 = vector.broadcast %cst_11 : f32 to vector<2x1xf32>
    %48 = arith.mulf %46, %47 : vector<2x1xf32>
    %49 = arith.mulf %48, %7 : vector<2x1xf32>
    %50 = arith.mulf %49, %45 : vector<2x1xf32>
    %c0_12 = arith.constant 0 : index
    %c0_13 = arith.constant 0 : index
    %c1_14 = arith.constant 1 : index
    %51 = vector.load %arg3[%c0_12, %c0_13, %c1_14] : memref<1x2x4xf32, #tpu.memory_space<vmem>>, vector<1x2x1xf32>
    %52 = vector.shape_cast %51 : vector<1x2x1xf32> to vector<2x1xf32>
    %53 = vector.shape_cast %50 : vector<2x1xf32> to vector<1x2x1xf32>
    tpu.vector_store %arg3[%c0_12, %c0_13, %c1_14], %53 {strides = array<i32>} : memref<1x2x4xf32, #tpu.memory_space<vmem>>, vector<1x2x1xf32>,
    %c2 = arith.constant 2 : index
    %c0_15 = arith.constant 0 : index
    %54 = tpu.strided_load %arg2[%c2, %c0_15] {strides = array<i32: 4, 1>} : memref<8x32xf32, #tpu.memory_space<vmem>>, vector<2x32xf32>
    %55 = vector.extract_strided_slice %54 {offsets = [0, 0], sizes = [2, 16], strides = [1, 1]} : vector<2x32xf32> to vector<2x16xf32>
    %56 = vector.extract_strided_slice %54 {offsets = [0, 16], sizes = [2, 16], strides = [1, 1]} : vector<2x32xf32> to vector<2x16xf32>
    %57 = arith.subf %55, %56 : vector<2x16xf32>
    %58 = arith.mulf %8, %57 : vector<2x16xf32>
    %59 = arith.addf %55, %56 : vector<2x16xf32>
    %60 = arith.mulf %9, %59 : vector<2x16xf32>
    %61 = arith.addf %58, %60 : vector<2x16xf32>
    %cst_16 = arith.constant dense<0.000000e+00> : vector<2xf32>
    %62 = vector.multi_reduction <add>, %61, %cst_16 [1] : vector<2x16xf32> to vector<2xf32>
    %63 = vector.shape_cast %62 : vector<2xf32> to vector<2x1xf32>
    %64 = arith.mulf %54, %54 : vector<2x32xf32>
    %cst_17 = arith.constant dense<0.000000e+00> : vector<2xf32>
    %65 = vector.multi_reduction <add>, %64, %cst_17 [1] : vector<2x32xf32> to vector<2xf32>
    %66 = vector.shape_cast %65 : vector<2xf32> to vector<2x1xf32>
    %67 = math.rsqrt %66 : vector<2x1xf32>
    %68 = math.absf %63 : vector<2x1xf32>
    %cst_18 = arith.constant 2.000000e+01 : f32
    %69 = vector.broadcast %cst_18 : f32 to vector<2x1xf32>
    %70 = arith.mulf %68, %69 : vector<2x1xf32>
    %71 = arith.mulf %70, %7 : vector<2x1xf32>
    %72 = arith.mulf %71, %67 : vector<2x1xf32>
    %c0_19 = arith.constant 0 : index
    %c0_20 = arith.constant 0 : index
    %c2_21 = arith.constant 2 : index
    %73 = vector.load %arg3[%c0_19, %c0_20, %c2_21] : memref<1x2x4xf32, #tpu.memory_space<vmem>>, vector<1x2x1xf32>
    %74 = vector.shape_cast %73 : vector<1x2x1xf32> to vector<2x1xf32>
    %75 = vector.shape_cast %72 : vector<2x1xf32> to vector<1x2x1xf32>
    tpu.vector_store %arg3[%c0_19, %c0_20, %c2_21], %75 {strides = array<i32>} : memref<1x2x4xf32, #tpu.memory_space<vmem>>, vector<1x2x1xf32>,
    %c3 = arith.constant 3 : index
    %c0_22 = arith.constant 0 : index
    %76 = tpu.strided_load %arg2[%c3, %c0_22] {strides = array<i32: 4, 1>} : memref<8x32xf32, #tpu.memory_space<vmem>>, vector<2x32xf32>
    %77 = vector.extract_strided_slice %76 {offsets = [0, 0], sizes = [2, 16], strides = [1, 1]} : vector<2x32xf32> to vector<2x16xf32>
    %78 = vector.extract_strided_slice %76 {offsets = [0, 16], sizes = [2, 16], strides = [1, 1]} : vector<2x32xf32> to vector<2x16xf32>
    %79 = arith.subf %77, %78 : vector<2x16xf32>
    %80 = arith.mulf %8, %79 : vector<2x16xf32>
    %81 = arith.addf %77, %78 : vector<2x16xf32>
    %82 = arith.mulf %9, %81 : vector<2x16xf32>
    %83 = arith.addf %80, %82 : vector<2x16xf32>
    %cst_23 = arith.constant dense<0.000000e+00> : vector<2xf32>
    %84 = vector.multi_reduction <add>, %83, %cst_23 [1] : vector<2x16xf32> to vector<2xf32>
    %85 = vector.shape_cast %84 : vector<2xf32> to vector<2x1xf32>
    %86 = arith.mulf %76, %76 : vector<2x32xf32>
    %cst_24 = arith.constant dense<0.000000e+00> : vector<2xf32>
    %87 = vector.multi_reduction <add>, %86, %cst_24 [1] : vector<2x32xf32> to vector<2xf32>
    %88 = vector.shape_cast %87 : vector<2xf32> to vector<2x1xf32>
    %89 = math.rsqrt %88 : vector<2x1xf32>
    %90 = math.absf %85 : vector<2x1xf32>
    %cst_25 = arith.constant 2.000000e+01 : f32
    %91 = vector.broadcast %cst_25 : f32 to vector<2x1xf32>
    %92 = arith.mulf %90, %91 : vector<2x1xf32>
    %93 = arith.mulf %92, %7 : vector<2x1xf32>
    %94 = arith.mulf %93, %89 : vector<2x1xf32>
    %c0_26 = arith.constant 0 : index
    %c0_27 = arith.constant 0 : index
    %c3_28 = arith.constant 3 : index
    %95 = vector.load %arg3[%c0_26, %c0_27, %c3_28] : memref<1x2x4xf32, #tpu.memory_space<vmem>>, vector<1x2x1xf32>
    %96 = vector.shape_cast %95 : vector<1x2x1xf32> to vector<2x1xf32>
    %97 = vector.shape_cast %94 : vector<2x1xf32> to vector<1x2x1xf32>
    tpu.vector_store %arg3[%c0_26, %c0_27, %c3_28], %97 {strides = array<i32>} : memref<1x2x4xf32, #tpu.memory_space<vmem>>, vector<1x2x1xf32>,
    return
  }
  func.func @transform_0(%arg0: i32) -> (i32, i32) {
    %c0_i32 = arith.constant 0 : i32
    %c0_i32_0 = arith.constant 0 : i32
    %c0_i32_1 = arith.constant 0 : i32
    return %c0_i32, %c0_i32_0 : i32, i32
  }
  func.func @transform_1(%arg0: i32) -> (i32, i32) {
    %c0_i32 = arith.constant 0 : i32
    %c0_i32_0 = arith.constant 0 : i32
    return %arg0, %c0_i32 : i32, i32
  }
  func.func @transform_2(%arg0: i32) -> (i32, i32, i32) {
    %c0_i32 = arith.constant 0 : i32
    %c0_i32_0 = arith.constant 0 : i32
    %c0_i32_1 = arith.constant 0 : i32
    return %arg0, %c0_i32, %c0_i32_0 : i32, i32, i32
  }
}

</mosaic_0001>

<llo_original>
// kernel: tpu_custom_call.1
$region0: #{tpu_custom_call.1}
  #allocation0 [shape = 'u32[]', space=smem, size = 0x4, offset = 0x4, fixed_abs, tag = 'smem constant byte address 0x4 - core index']
  #allocation1 [shape = 'u32[144,128]{1,0:T(1,128)}', space=vmem, size = 0x12000, scoped, tag = 'internal scratch']
  %s0 = inlined_call_operand.hbm [shape: f32[8,32], index: 0, kind: input, shape index: {}]
  %s1 = inlined_call_operand.hbm [shape: f32[8,32], index: 1, kind: input, shape index: {}]
  %s2 = inlined_call_operand.hbm [shape: f32[1,2,4], index: 2, kind: output, shape index: {}]
  %s3 = sld [smem:[#allocation0]]
  $region26: #{tpu_custom_call.1} parent=0
    _
  %s5 = ssub.s32 1, %s3
  %s6 = scalar_select 0, %s5, %s3
  $region1: #{tpu_custom_call.1} parent=0
    #allocation2 [shape = 'u8[4096]{0}', space=vmem, size = 0x1000, scoped, tag = 'input window, operand 0, single buffered']
    #allocation3 [shape = 's32[1]{0}', space=sflag, size = 0x4, scoped, tag = 'scoped memory for tpu_custom_call.1']
    #allocation4 [shape = 's32[1]{0}', space=sflag, size = 0x4, scoped, tag = 'scoped memory for tpu_custom_call.1']
    #allocation5 [shape = 'u8[4096]{0}', space=vmem, size = 0x1000, scoped, tag = 'input window, operand 1, single buffered']
    #allocation6 [shape = 's32[1]{0}', space=sflag, size = 0x4, scoped, tag = 'scoped memory for tpu_custom_call.1']
    #allocation7 [shape = 'u8[1024]{0}', space=vmem, size = 0x400, scoped, tag = 'output window, operand 0, single buffered']
    %7 = vsyncpa [#allocation3], 0
    %8 = vsyncpa [#allocation6], 0
    %9 = vsyncpa [#allocation4], 0
    // Predicated region
    $region2: #{tpu_custom_call.1} parent=1 // pred_check
      _
    $region3: #{tpu_custom_call.1} parent=1 // pred_check_branch
      %11 = sbr.rel (0) target = $region5
    $region4: #{tpu_custom_call.1} parent=1 // pred_region
      %s13 = ssub.s32 128, 128
      %14 = vsyncadd [#allocation3], %s13
      %s16 = sshll.u32 [#allocation2], 4
      %s17 = int_to_ptr.vmem [resolvable:$true] %s16
      %19 = dma.hbm_to_vmem [thread:$0]  %s0, 128, %s17, [#allocation3]
    $region5: #{tpu_custom_call.1} parent=1 // pred_fallthru
      _
    // Predicated region
    $region6: #{tpu_custom_call.1} parent=1 // pred_check
      _
    $region7: #{tpu_custom_call.1} parent=1 // pred_check_branch
      %21 = sbr.rel (0) target = $region9
    $region8: #{tpu_custom_call.1} parent=1 // pred_region
      %s23 = ssub.s32 128, 128
      %24 = vsyncadd [#allocation6], %s23
      %s26 = sshll.u32 [#allocation5], 4
      %s27 = int_to_ptr.vmem [resolvable:$true] %s26
      %29 = dma.hbm_to_vmem [thread:$0]  %s1, 128, %s27, [#allocation6]
    $region9: #{tpu_custom_call.1} parent=1 // pred_fallthru
      _
    // Predicated region
    $region10: #{tpu_custom_call.1} parent=1 // pred_check
      _
    $region11: #{tpu_custom_call.1} parent=1 // pred_check_branch
      %31 = sbr.rel (0) target = $region13
    $region12: #{tpu_custom_call.1} parent=1 // pred_region
      %32 = dma.done [#allocation3], 128
    $region13: #{tpu_custom_call.1} parent=1 // pred_fallthru
      _
    // Predicated region
    $region14: #{tpu_custom_call.1} parent=1 // pred_check
      _
    $region15: #{tpu_custom_call.1} parent=1 // pred_check_branch
      %34 = sbr.rel (0) target = $region17
    $region16: #{tpu_custom_call.1} parent=1 // pred_region
      %35 = dma.done [#allocation6], 128
    $region17: #{tpu_custom_call.1} parent=1 // pred_fallthru
      _
    %s36 = smul.u32 0, 2
    %s37 = scalar_lea.vmem [#allocation2], %s36
    %v38 = vld [vmem:[%s37] sm:$0x3]
    %v39 = vmul.f32 %v38, %v38
    %vm40 = vcmask 254976
    %v41 = vsel %vm40, %v39, 0.0
    %42 = vadd.xlane.f32.xlu0 %v41
    %v43 = vpop.xlane.xlu0 %42
    %v44 = vrsqrt.pop %v43
    %v45 = vld [vmem:[#allocation5] ss:$4 sm:$0x3]
    %47 = vrot.lane.b32.xlu0 %v45, 112
    %v48 = vpop.permute.xlu0 %47
    %v50 = vsub.f32 %v45, %v48
    %v51 = vmul.f32 %v38, %v50
    %v52 = vadd.f32 %v45, %v48
    %54 = vrot.lane.b32.xlu0 %v52, 16
    %v55 = vpop.permute.xlu0 %54
    %v57 = vmul.f32 %v38, %v55
    %59 = vrot.lane.b32.xlu0 %v57, 112
    %v60 = vpop.permute.xlu0 %59
    %v62 = vadd.f32 %v51, %v60
    %vm63 = vcmask 123904
    %v64 = vsel %vm63, %v62, 0.0
    %65 = vadd.xlane.f32.xlu0 %v64
    %v66 = vpop.xlane.xlu0 %65
    %v67 = vmul.f32 %v45, %v45
    %v68 = vsel %vm40, %v67, 0.0
    %69 = vadd.xlane.f32.xlu0 %v68
    %v70 = vpop.xlane.xlu0 %69
    %v71 = vrsqrt.pop %v70
    %v72 = vand.u32 2147483647, %v66
    %v73 = vmul.f32 %v72, 20.0
    %v74 = vmul.f32 %v73, %v44
    %v75 = vmul.f32 %v74, %v71
    %vm76 = vcmask 1024
    %77 = vst.msk [vmem:[#allocation7] sm:$0x3] %vm76, %v75
    %s78 = scalar_lea.vmem [#allocation5], 1
    %v79 = vld [vmem:[%s78] ss:$4 sm:$0x3]
    %81 = vrot.lane.b32.xlu0 %v79, 112
    %v82 = vpop.permute.xlu0 %81
    %v84 = vsub.f32 %v79, %v82
    %v85 = vmul.f32 %v38, %v84
    %v86 = vadd.f32 %v79, %v82
    %88 = vrot.lane.b32.xlu0 %v86, 16
    %v89 = vpop.permute.xlu0 %88
    %v91 = vmul.f32 %v38, %v89
    %93 = vrot.lane.b32.xlu0 %v91, 112
    %v94 = vpop.permute.xlu0 %93
    %v96 = vadd.f32 %v85, %v94
    %v97 = vsel %vm63, %v96, 0.0
    %98 = vadd.xlane.f32.xlu0 %v97
    %v99 = vpop.xlane.xlu0 %98
    %v100 = vmul.f32 %v79, %v79
    %v101 = vsel %vm40, %v100, 0.0
    %102 = vadd.xlane.f32.xlu0 %v101
    %v103 = vpop.xlane.xlu0 %102
    %v104 = vrsqrt.pop %v103
    %v105 = vand.u32 2147483647, %v99
    %v106 = vmul.f32 %v105, 20.0
    %v107 = vmul.f32 %v106, %v44
    %v108 = vmul.f32 %v107, %v104
    %vm109 = vcmask 9224
    %110 = vst.msk [vmem:[#allocation7] sm:$0x3] %vm109, %v108
    %s111 = scalar_lea.vmem [#allocation5], 2
    %v112 = vld [vmem:[%s111] ss:$4 sm:$0x3]
    %114 = vrot.lane.b32.xlu0 %v112, 112
    %v115 = vpop.permute.xlu0 %114
    %v117 = vsub.f32 %v112, %v115
    %v118 = vmul.f32 %v38, %v117
    %v119 = vadd.f32 %v112, %v115
    %121 = vrot.lane.b32.xlu0 %v119, 16
    %v122 = vpop.permute.xlu0 %121
    %v124 = vmul.f32 %v38, %v122
    %126 = vrot.lane.b32.xlu0 %v124, 112
    %v127 = vpop.permute.xlu0 %126
    %v129 = vadd.f32 %v118, %v127
    %v130 = vsel %vm63, %v129, 0.0
    %131 = vadd.xlane.f32.xlu0 %v130
    %v132 = vpop.xlane.xlu0 %131
    %v133 = vmul.f32 %v112, %v112
    %v134 = vsel %vm40, %v133, 0.0
    %135 = vadd.xlane.f32.xlu0 %v134
    %v136 = vpop.xlane.xlu0 %135
    %v137 = vrsqrt.pop %v136
    %v138 = vand.u32 2147483647, %v132
    %v139 = vmul.f32 %v138, 20.0
    %v140 = vmul.f32 %v139, %v44
    %v141 = vmul.f32 %v140, %v137
    %vm142 = vcmask 17424
    %143 = vst.msk [vmem:[#allocation7] sm:$0x3] %vm142, %v141
    %s144 = scalar_lea.vmem [#allocation5], 3
    %v145 = vld [vmem:[%s144] ss:$4 sm:$0x3]
    %147 = vrot.lane.b32.xlu0 %v145, 112
    %v148 = vpop.permute.xlu0 %147
    %v150 = vsub.f32 %v145, %v148
    %v151 = vmul.f32 %v38, %v150
    %v152 = vadd.f32 %v145, %v148
    %154 = vrot.lane.b32.xlu0 %v152, 16
    %v155 = vpop.permute.xlu0 %154
    %v157 = vmul.f32 %v38, %v155
    %159 = vrot.lane.b32.xlu0 %v157, 112
    %v160 = vpop.permute.xlu0 %159
    %v162 = vadd.f32 %v151, %v160
    %v163 = vsel %vm63, %v162, 0.0
    %164 = vadd.xlane.f32.xlu0 %v163
    %v165 = vpop.xlane.xlu0 %164
    %v166 = vmul.f32 %v145, %v145
    %v167 = vsel %vm40, %v166, 0.0
    %168 = vadd.xlane.f32.xlu0 %v167
    %v169 = vpop.xlane.xlu0 %168
    %v170 = vrsqrt.pop %v169
    %v171 = vand.u32 2147483647, %v165
    %v172 = vmul.f32 %v171, 20.0
    %v173 = vmul.f32 %v172, %v44
    %v174 = vmul.f32 %v173, %v170
    %vm175 = vcmask 25624
    %176 = vst.msk [vmem:[#allocation7] sm:$0x3] %vm175, %v174
    // Predicated region
    $region18: #{tpu_custom_call.1} parent=1 // pred_check
      _
    $region19: #{tpu_custom_call.1} parent=1 // pred_check_branch
      %178 = sbr.rel (0) target = $region21
    $region20: #{tpu_custom_call.1} parent=1 // pred_region
      %s180 = ssub.s32 32, 32
      %181 = vsyncadd [#allocation4], %s180
      %s183 = sshll.u32 [#allocation7], 4
      %s184 = int_to_ptr.vmem [resolvable:$true] %s183
      %186 = dma.vmem_to_hbm [thread:$0]  %s184, 32, %s2, [#allocation4]
    $region21: #{tpu_custom_call.1} parent=1 // pred_fallthru
      _
    // Predicated region
    $region22: #{tpu_custom_call.1} parent=1 // pred_check
      _
    $region23: #{tpu_custom_call.1} parent=1 // pred_check_branch
      %188 = sbr.rel (0) target = $region25
    $region24: #{tpu_custom_call.1} parent=1 // pred_region
      %189 = dma.done [#allocation4], 32
    $region25: #{tpu_custom_call.1} parent=1 // pred_fallthru
      _
    %190 = vsyncpa [#allocation3], 1
    %191 = vsyncpa [#allocation6], 1
    %192 = vsyncpa [#allocation4], 1

</llo_original>
